<compile_context>
chip_gen: v6e
topology: v6e:2x2x1
jax: 0.10.0
libtpu: 0.0.40
codegen_flags: <defaults>
</compile_context>

<pallas_src>
import jax
import jax.numpy as jnp
from jax.experimental import pallas as pl
from jax.experimental.pallas import tpu as pltpu


# ----------------------------------------------------------------------------
# Kernel: L2-normalize each row of a (tile_m, C) block over the channel axis.
# ----------------------------------------------------------------------------
def _l2norm_rows_kernel(x_ref, o_ref):
    x = x_ref[...].astype(jnp.float32)                       # (tile_m, C)
    ss = jnp.sum(x * x, axis=-1, keepdims=True)               # (tile_m, 1)
    norm = jnp.sqrt(ss)                                        # matches x.pow(2).sum(1).pow(1/2)
    inv = pl.reciprocal(norm + 1e-7, approx=True)              # per-row, EUP slot
    o_ref[...] = (x * inv).astype(o_ref.dtype)                 # one broadcast VPU multiply


def _round_up(n, m):
    return ((n + m - 1) // m) * m


def l2_normalize_rows(x2d, max_rows=1024):
    """L2-normalize rows of a 2-D array: x / (sqrt(sum(x**2, axis=1)) + 1e-7)."""
    M, C = x2d.shape
    itemsize = jnp.dtype(x2d.dtype).itemsize

    # Row tile: keep one input block around ~2 MiB so the double-buffered
    # in+out streams fit comfortably inside v5e's 16 MiB scoped-VMEM default.
    budget_rows = max(8, (2 * 1024 * 1024) // max(1, C * itemsize))
    tile_m = min(M, max_rows, budget_rows)

    if tile_m < M:
        tile_m = max(8, (tile_m // 8) * 8)      # second-minor dim must be a multiple of 8
        Mp = _round_up(M, tile_m)
    else:
        tile_m = M                              # single block: full-extent dims are allowed
        Mp = M

    xp = x2d if Mp == M else jnp.pad(x2d, ((0, Mp - M), (0, 0)))  # zero rows normalize to 0

    cost = pl.CostEstimate(
        flops=int(3 * Mp * C),                  # square + reduce-add + broadcast multiply
        transcendentals=int(2 * Mp),            # sqrt + reciprocal per row
        bytes_accessed=int(2 * Mp * C * itemsize),
    )

    out = pl.pallas_call(
        _l2norm_rows_kernel,
        out_shape=jax.ShapeDtypeStruct((Mp, C), x2d.dtype),
        grid=(Mp // tile_m,),
        in_specs=[pl.BlockSpec((tile_m, C), lambda i: (i, 0))],
        out_specs=pl.BlockSpec((tile_m, C), lambda i: (i, 0)),
        compiler_params=pltpu.CompilerParams(
            dimension_semantics=("parallel",)),
        cost_estimate=cost,
    )(xp)
    return out if Mp == M else out[:M]


# ----------------------------------------------------------------------------
# Normalize.forward equivalent: normalize over dim 1 of an N-D tensor.
# ----------------------------------------------------------------------------
def normalize(x, power=2, max_rows=1024):
    assert power == 2, "only power=2 (the module default) is implemented"
    # TODO(synk): general L-p norm (power != 2) not implemented in the kernel.
    if x.ndim == 2:
        return l2_normalize_rows(x, max_rows=max_rows)
    # N-D (e.g. NCHW): move the channel dim last, flatten, normalize rows, restore.
    xm = jnp.moveaxis(x, 1, -1)
    shp = xm.shape
    y = l2_normalize_rows(xm.reshape(-1, shp[-1]), max_rows=max_rows)
    return jnp.moveaxis(y.reshape(shp), -1, 1)


if __name__ == "__main__":
    key = jax.random.PRNGKey(0)
    k1, k2, k3 = jax.random.split(key, 3)

    def ref(x):
        n = jnp.sqrt(jnp.sum(x.astype(jnp.float32) ** 2, axis=1, keepdims=True))
        return (x / (n + 1e-7)).astype(x.dtype)

    # (a) Realistic CUT / PatchSampleF usage: (B*num_patches, nc) with lane-dense nc=256.
    xa = jax.random.normal(k1, (2 * 64, 256), jnp.float32)
    ya = jax.block_until_ready(normalize(xa))
    assert ya.shape == xa.shape
    assert jnp.allclose(ya, ref(xa), rtol=5e-3, atol=1e-3), "2D lane-dense case mismatch"

    # (b) NCHW feature map with tiny channel count (dim-1 normalization).
    xb = jax.random.normal(k2, (2, 4, 16, 16), jnp.float32)
    yb = jax.block_until_ready(normalize(xb))
    assert yb.shape == xb.shape
    assert jnp.allclose(yb, ref(xb), rtol=5e-3, atol=1e-3), "NCHW case mismatch"

    # (c) Row count that does not divide the tile (exercises pad + slice-back path).
    xc = jax.random.normal(k3, (130, 96), jnp.float32)
    yc = jax.block_until_ready(normalize(xc, max_rows=64))
    assert yc.shape == xc.shape
    assert jnp.allclose(yc, ref(xc), rtol=5e-3, atol=1e-3), "ragged-rows case mismatch"

    print("KERNEL_OK")
</pallas_src>

<mosaic_0001>
module attributes {stable_mosaic.version = 11 : i64} {
  func.func @_l2norm_rows_kernel(%arg0: i32, %arg1: memref<128x256xf32, #tpu.memory_space<vmem>>, %arg2: memref<128x256xf32, #tpu.memory_space<vmem>>) attributes {dimension_semantics = [#tpu.dimension_semantics<parallel>], iteration_bounds = array<i64: 1>, scalar_prefetch = 0 : i64, scratch_operands = 0 : i64, tpu.core_type = #tpu.core_type<tc>, window_params = [{transform_indices = @transform_0, window_bounds = array<i64: 128, 256>}, {transform_indices = @transform_1, window_bounds = array<i64: 128, 256>}]} {
    %c0 = arith.constant 0 : index
    %c0_0 = arith.constant 0 : index
    %0 = vector.load %arg1[%c0, %c0_0] : memref<128x256xf32, #tpu.memory_space<vmem>>, vector<128x256xf32>
    %1 = arith.mulf %0, %0 : vector<128x256xf32>
    %cst = arith.constant dense<0.000000e+00> : vector<128xf32>
    %2 = vector.multi_reduction <add>, %1, %cst [1] : vector<128x256xf32> to vector<128xf32>
    %3 = vector.shape_cast %2 : vector<128xf32> to vector<128x1xf32>
    %4 = math.sqrt %3 : vector<128x1xf32>
    %cst_1 = arith.constant 1.000000e-07 : f32
    %5 = vector.broadcast %cst_1 : f32 to vector<128x1xf32>
    %6 = arith.addf %4, %5 : vector<128x1xf32>
    %7 = tpu.reciprocal %6 {approx = true} : vector<128x1xf32> -> vector<128x1xf32>
    %8 = vector.broadcast %7 : vector<128x1xf32> to vector<128x256xf32>
    %9 = arith.mulf %0, %8 : vector<128x256xf32>
    %c0_2 = arith.constant 0 : index
    %c0_3 = arith.constant 0 : index
    %10 = vector.load %arg2[%c0_2, %c0_3] : memref<128x256xf32, #tpu.memory_space<vmem>>, vector<128x256xf32>
    tpu.vector_store %arg2[%c0_2, %c0_3], %9 {strides = array<i32>} : memref<128x256xf32, #tpu.memory_space<vmem>>, vector<128x256xf32>,
    return
  }
  func.func @transform_0(%arg0: i32) -> (i32, i32) {
    %c0_i32 = arith.constant 0 : i32
    %c0_i32_0 = arith.constant 0 : i32
    return %arg0, %c0_i32 : i32, i32
  }
  func.func @transform_1(%arg0: i32) -> (i32, i32) {
    %c0_i32 = arith.constant 0 : i32
    %c0_i32_0 = arith.constant 0 : i32
    return %arg0, %c0_i32 : i32, i32
  }
}

</mosaic_0001>

<llo_original>
// kernel: tpu_custom_call.1
$region0: #{tpu_custom_call.1}
  #allocation0 [shape = 'u32[]', space=smem, size = 0x4, offset = 0x4, fixed_abs, tag = 'smem constant byte address 0x4 - core index']
  #allocation1 [shape = 'u32[144,128]{1,0:T(1,128)}', space=vmem, size = 0x12000, scoped, tag = 'internal scratch']
  %s0 = inlined_call_operand.hbm [shape: f32[128,256], index: 0, kind: input, shape index: {}]
  %s1 = inlined_call_operand.hbm [shape: f32[128,256], index: 1, kind: output, shape index: {}]
  %s2 = sld [smem:[#allocation0]]
  $region18: #{tpu_custom_call.1} parent=0
    _
  %s4 = ssub.s32 1, %s2
  %s5 = scalar_select 0, %s4, %s2
  $region1: #{tpu_custom_call.1} parent=0
    #allocation2 [shape = 'u8[131072]{0}', space=vmem, size = 0x20000, scoped, tag = 'input window, operand 0, single buffered']
    #allocation3 [shape = 's32[1]{0}', space=sflag, size = 0x4, scoped, tag = 'scoped memory for tpu_custom_call.1']
    #allocation4 [shape = 's32[1]{0}', space=sflag, size = 0x4, scoped, tag = 'scoped memory for tpu_custom_call.1']
    #allocation5 [shape = 'u8[131072]{0}', space=vmem, size = 0x20000, scoped, tag = 'output window, operand 0, single buffered']
    %6 = vsyncpa [#allocation3], 0
    %7 = vsyncpa [#allocation4], 0
    // Predicated region
    $region2: #{tpu_custom_call.1} parent=1 // pred_check
      _
    $region3: #{tpu_custom_call.1} parent=1 // pred_check_branch
      %9 = sbr.rel (0) target = $region5
    $region4: #{tpu_custom_call.1} parent=1 // pred_region
      %s11 = ssub.s32 4096, 4096
      %12 = vsyncadd [#allocation3], %s11
      %s13 = sshll.u32 [#allocation2], 4
      %s14 = int_to_ptr.vmem [resolvable:$true] %s13
      %19 = dma.hbm_to_vmem [thread:$0]  %s0, 4096, %s14, [#allocation3], 256, 256, 16
    $region5: #{tpu_custom_call.1} parent=1 // pred_fallthru
      _
    // Predicated region
    $region6: #{tpu_custom_call.1} parent=1 // pred_check
      _
    $region7: #{tpu_custom_call.1} parent=1 // pred_check_branch
      %21 = sbr.rel (0) target = $region9
    $region8: #{tpu_custom_call.1} parent=1 // pred_region
      %22 = dma.done [#allocation3], 4096
    $region9: #{tpu_custom_call.1} parent=1 // pred_fallthru
      _
    %v23 = vld [vmem:[#allocation2] sm:$0xff]
    %v24 = vld [vmem:[#allocation2 + $0x8] sm:$0xff]
    %v25 = vld [vmem:[#allocation2 + $0x10] sm:$0xff]
    %v26 = vld [vmem:[#allocation2 + $0x18] sm:$0xff]
    %v27 = vld [vmem:[#allocation2 + $0x20] sm:$0xff]
    %v28 = vld [vmem:[#allocation2 + $0x28] sm:$0xff]
    %v29 = vld [vmem:[#allocation2 + $0x30] sm:$0xff]
    %v30 = vld [vmem:[#allocation2 + $0x38] sm:$0xff]
    %v31 = vld [vmem:[#allocation2 + $0x40] sm:$0xff]
    %v32 = vld [vmem:[#allocation2 + $0x48] sm:$0xff]
    %v33 = vld [vmem:[#allocation2 + $0x50] sm:$0xff]
    %v34 = vld [vmem:[#allocation2 + $0x58] sm:$0xff]
    %v35 = vld [vmem:[#allocation2 + $0x60] sm:$0xff]
    %v36 = vld [vmem:[#allocation2 + $0x68] sm:$0xff]
    %v37 = vld [vmem:[#allocation2 + $0x70] sm:$0xff]
    %v38 = vld [vmem:[#allocation2 + $0x78] sm:$0xff]
    %v39 = vld [vmem:[#allocation2 + $0x80] sm:$0xff]
    %v40 = vld [vmem:[#allocation2 + $0x88] sm:$0xff]
    %v41 = vld [vmem:[#allocation2 + $0x90] sm:$0xff]
    %v42 = vld [vmem:[#allocation2 + $0x98] sm:$0xff]
    %v43 = vld [vmem:[#allocation2 + $0xa0] sm:$0xff]
    %v44 = vld [vmem:[#allocation2 + $0xa8] sm:$0xff]
    %v45 = vld [vmem:[#allocation2 + $0xb0] sm:$0xff]
    %v46 = vld [vmem:[#allocation2 + $0xb8] sm:$0xff]
    %v47 = vld [vmem:[#allocation2 + $0xc0] sm:$0xff]
    %v48 = vld [vmem:[#allocation2 + $0xc8] sm:$0xff]
    %v49 = vld [vmem:[#allocation2 + $0xd0] sm:$0xff]
    %v50 = vld [vmem:[#allocation2 + $0xd8] sm:$0xff]
    %v51 = vld [vmem:[#allocation2 + $0xe0] sm:$0xff]
    %v52 = vld [vmem:[#allocation2 + $0xe8] sm:$0xff]
    %v53 = vld [vmem:[#allocation2 + $0xf0] sm:$0xff]
    %v54 = vld [vmem:[#allocation2 + $0xf8] sm:$0xff]
    %v55 = vmul.f32 %v23, %v23
    %v56 = vmul.f32 %v24, %v24
    %v57 = vmul.f32 %v25, %v25
    %v58 = vmul.f32 %v26, %v26
    %v59 = vmul.f32 %v27, %v27
    %v60 = vmul.f32 %v28, %v28
    %v61 = vmul.f32 %v29, %v29
    %v62 = vmul.f32 %v30, %v30
    %v63 = vmul.f32 %v31, %v31
    %v64 = vmul.f32 %v32, %v32
    %v65 = vmul.f32 %v33, %v33
    %v66 = vmul.f32 %v34, %v34
    %v67 = vmul.f32 %v35, %v35
    %v68 = vmul.f32 %v36, %v36
    %v69 = vmul.f32 %v37, %v37
    %v70 = vmul.f32 %v38, %v38
    %v71 = vmul.f32 %v39, %v39
    %v72 = vmul.f32 %v40, %v40
    %v73 = vmul.f32 %v41, %v41
    %v74 = vmul.f32 %v42, %v42
    %v75 = vmul.f32 %v43, %v43
    %v76 = vmul.f32 %v44, %v44
    %v77 = vmul.f32 %v45, %v45
    %v78 = vmul.f32 %v46, %v46
    %v79 = vmul.f32 %v47, %v47
    %v80 = vmul.f32 %v48, %v48
    %v81 = vmul.f32 %v49, %v49
    %v82 = vmul.f32 %v50, %v50
    %v83 = vmul.f32 %v51, %v51
    %v84 = vmul.f32 %v52, %v52
    %v85 = vmul.f32 %v53, %v53
    %v86 = vmul.f32 %v54, %v54
    %v87 = vadd.f32 %v55, %v56
    %88 = vadd.xlane.f32.xlu0 %v87
    %v89 = vpop.xlane.xlu0 %88
    %v90 = vadd.f32 %v57, %v58
    %91 = vadd.xlane.f32.xlu0 %v90
    %v92 = vpop.xlane.xlu0 %91
    %v93 = vadd.f32 %v59, %v60
    %94 = vadd.xlane.f32.xlu0 %v93
    %v95 = vpop.xlane.xlu0 %94
    %v96 = vadd.f32 %v61, %v62
    %97 = vadd.xlane.f32.xlu0 %v96
    %v98 = vpop.xlane.xlu0 %97
    %v99 = vadd.f32 %v63, %v64
    %100 = vadd.xlane.f32.xlu0 %v99
    %v101 = vpop.xlane.xlu0 %100
    %v102 = vadd.f32 %v65, %v66
    %103 = vadd.xlane.f32.xlu0 %v102
    %v104 = vpop.xlane.xlu0 %103
    %v105 = vadd.f32 %v67, %v68
    %106 = vadd.xlane.f32.xlu0 %v105
    %v107 = vpop.xlane.xlu0 %106
    %v108 = vadd.f32 %v69, %v70
    %109 = vadd.xlane.f32.xlu0 %v108
    %v110 = vpop.xlane.xlu0 %109
    %v111 = vadd.f32 %v71, %v72
    %112 = vadd.xlane.f32.xlu0 %v111
    %v113 = vpop.xlane.xlu0 %112
    %v114 = vadd.f32 %v73, %v74
    %115 = vadd.xlane.f32.xlu0 %v114
    %v116 = vpop.xlane.xlu0 %115
    %v117 = vadd.f32 %v75, %v76
    %118 = vadd.xlane.f32.xlu0 %v117
    %v119 = vpop.xlane.xlu0 %118
    %v120 = vadd.f32 %v77, %v78
    %121 = vadd.xlane.f32.xlu0 %v120
    %v122 = vpop.xlane.xlu0 %121
    %v123 = vadd.f32 %v79, %v80
    %124 = vadd.xlane.f32.xlu0 %v123
    %v125 = vpop.xlane.xlu0 %124
    %v126 = vadd.f32 %v81, %v82
    %127 = vadd.xlane.f32.xlu0 %v126
    %v128 = vpop.xlane.xlu0 %127
    %v129 = vadd.f32 %v83, %v84
    %130 = vadd.xlane.f32.xlu0 %v129
    %v131 = vpop.xlane.xlu0 %130
    %v132 = vadd.f32 %v85, %v86
    %133 = vadd.xlane.f32.xlu0 %v132
    %v134 = vpop.xlane.xlu0 %133
    %v135 = vrsqrt.pop %v89
    %v136 = vmul.f32 %v89, %v135
    %vm137 = vcmp.eq.f32.partialorder %v89, inf
    %v138 = vsel %vm137, %v89, %v136
    %vm139 = vcmp.eq.f32.partialorder %v89, 0.0
    %v140 = vand.u32 %v89, 2147483648
    %v141 = vsel %vm139, %v140, %v138
    %v142 = vrsqrt.pop %v92
    %v143 = vmul.f32 %v92, %v142
    %vm144 = vcmp.eq.f32.partialorder %v92, inf
    %v145 = vsel %vm144, %v92, %v143
    %vm146 = vcmp.eq.f32.partialorder %v92, 0.0
    %v147 = vand.u32 %v92, 2147483648
    %v148 = vsel %vm146, %v147, %v145
    %v149 = vrsqrt.pop %v95
    %v150 = vmul.f32 %v95, %v149
    %vm151 = vcmp.eq.f32.partialorder %v95, inf
    %v152 = vsel %vm151, %v95, %v150
    %vm153 = vcmp.eq.f32.partialorder %v95, 0.0
    %v154 = vand.u32 %v95, 2147483648
    %v155 = vsel %vm153, %v154, %v152
    %v156 = vrsqrt.pop %v98
    %v157 = vmul.f32 %v98, %v156
    %vm158 = vcmp.eq.f32.partialorder %v98, inf
    %v159 = vsel %vm158, %v98, %v157
    %vm160 = vcmp.eq.f32.partialorder %v98, 0.0
    %v161 = vand.u32 %v98, 2147483648
    %v162 = vsel %vm160, %v161, %v159
    %v163 = vrsqrt.pop %v101
    %v164 = vmul.f32 %v101, %v163
    %vm165 = vcmp.eq.f32.partialorder %v101, inf
    %v166 = vsel %vm165, %v101, %v164
    %vm167 = vcmp.eq.f32.partialorder %v101, 0.0
    %v168 = vand.u32 %v101, 2147483648
    %v169 = vsel %vm167, %v168, %v166
    %v170 = vrsqrt.pop %v104
    %v171 = vmul.f32 %v104, %v170
    %vm172 = vcmp.eq.f32.partialorder %v104, inf
    %v173 = vsel %vm172, %v104, %v171
    %vm174 = vcmp.eq.f32.partialorder %v104, 0.0
    %v175 = vand.u32 %v104, 2147483648
    %v176 = vsel %vm174, %v175, %v173
    %v177 = vrsqrt.pop %v107
    %v178 = vmul.f32 %v107, %v177
    %vm179 = vcmp.eq.f32.partialorder %v107, inf
    %v180 = vsel %vm179, %v107, %v178
    %vm181 = vcmp.eq.f32.partialorder %v107, 0.0
    %v182 = vand.u32 %v107, 2147483648
    %v183 = vsel %vm181, %v182, %v180
    %v184 = vrsqrt.pop %v110
    %v185 = vmul.f32 %v110, %v184
    %vm186 = vcmp.eq.f32.partialorder %v110, inf
    %v187 = vsel %vm186, %v110, %v185
    %vm188 = vcmp.eq.f32.partialorder %v110, 0.0
    %v189 = vand.u32 %v110, 2147483648
    %v190 = vsel %vm188, %v189, %v187
    %v191 = vrsqrt.pop %v113
    %v192 = vmul.f32 %v113, %v191
    %vm193 = vcmp.eq.f32.partialorder %v113, inf
    %v194 = vsel %vm193, %v113, %v192
    %vm195 = vcmp.eq.f32.partialorder %v113, 0.0
    %v196 = vand.u32 %v113, 2147483648
    %v197 = vsel %vm195, %v196, %v194
    %v198 = vrsqrt.pop %v116
    %v199 = vmul.f32 %v116, %v198
    %vm200 = vcmp.eq.f32.partialorder %v116, inf
    %v201 = vsel %vm200, %v116, %v199
    %vm202 = vcmp.eq.f32.partialorder %v116, 0.0
    %v203 = vand.u32 %v116, 2147483648
    %v204 = vsel %vm202, %v203, %v201
    %v205 = vrsqrt.pop %v119
    %v206 = vmul.f32 %v119, %v205
    %vm207 = vcmp.eq.f32.partialorder %v119, inf
    %v208 = vsel %vm207, %v119, %v206
    %vm209 = vcmp.eq.f32.partialorder %v119, 0.0
    %v210 = vand.u32 %v119, 2147483648
    %v211 = vsel %vm209, %v210, %v208
    %v212 = vrsqrt.pop %v122
    %v213 = vmul.f32 %v122, %v212
    %vm214 = vcmp.eq.f32.partialorder %v122, inf
    %v215 = vsel %vm214, %v122, %v213
    %vm216 = vcmp.eq.f32.partialorder %v122, 0.0
    %v217 = vand.u32 %v122, 2147483648
    %v218 = vsel %vm216, %v217, %v215
    %v219 = vrsqrt.pop %v125
    %v220 = vmul.f32 %v125, %v219
    %vm221 = vcmp.eq.f32.partialorder %v125, inf
    %v222 = vsel %vm221, %v125, %v220
    %vm223 = vcmp.eq.f32.partialorder %v125, 0.0
    %v224 = vand.u32 %v125, 2147483648
    %v225 = vsel %vm223, %v224, %v222
    %v226 = vrsqrt.pop %v128
    %v227 = vmul.f32 %v128, %v226
    %vm228 = vcmp.eq.f32.partialorder %v128, inf
    %v229 = vsel %vm228, %v128, %v227
    %vm230 = vcmp.eq.f32.partialorder %v128, 0.0
    %v231 = vand.u32 %v128, 2147483648
    %v232 = vsel %vm230, %v231, %v229
    %v233 = vrsqrt.pop %v131
    %v234 = vmul.f32 %v131, %v233
    %vm235 = vcmp.eq.f32.partialorder %v131, inf
    %v236 = vsel %vm235, %v131, %v234
    %vm237 = vcmp.eq.f32.partialorder %v131, 0.0
    %v238 = vand.u32 %v131, 2147483648
    %v239 = vsel %vm237, %v238, %v236
    %v240 = vrsqrt.pop %v134
    %v241 = vmul.f32 %v134, %v240
    %vm242 = vcmp.eq.f32.partialorder %v134, inf
    %v243 = vsel %vm242, %v134, %v241
    %vm244 = vcmp.eq.f32.partialorder %v134, 0.0
    %v245 = vand.u32 %v134, 2147483648
    %v246 = vsel %vm244, %v245, %v243
    %v247 = vadd.f32 %v141, 1e-07
    %v248 = vadd.f32 %v148, 1e-07
    %v249 = vadd.f32 %v155, 1e-07
    %v250 = vadd.f32 %v162, 1e-07
    %v251 = vadd.f32 %v169, 1e-07
    %v252 = vadd.f32 %v176, 1e-07
    %v253 = vadd.f32 %v183, 1e-07
    %v254 = vadd.f32 %v190, 1e-07
    %v255 = vadd.f32 %v197, 1e-07
    %v256 = vadd.f32 %v204, 1e-07
    %v257 = vadd.f32 %v211, 1e-07
    %v258 = vadd.f32 %v218, 1e-07
    %v259 = vadd.f32 %v225, 1e-07
    %v260 = vadd.f32 %v232, 1e-07
    %v261 = vadd.f32 %v239, 1e-07
    %v262 = vadd.f32 %v246, 1e-07
    %v263 = vrcp.pop %v247
    %v264 = vrcp.pop %v248
    %v265 = vrcp.pop %v249
    %v266 = vrcp.pop %v250
    %v267 = vrcp.pop %v251
    %v268 = vrcp.pop %v252
    %v269 = vrcp.pop %v253
    %v270 = vrcp.pop %v254
    %v271 = vrcp.pop %v255
    %v272 = vrcp.pop %v256
    %v273 = vrcp.pop %v257
    %v274 = vrcp.pop %v258
    %v275 = vrcp.pop %v259
    %v276 = vrcp.pop %v260
    %v277 = vrcp.pop %v261
    %v278 = vrcp.pop %v262
    %v279 = vmul.f32 %v23, %v263
    %v280 = vmul.f32 %v24, %v263
    %v281 = vmul.f32 %v25, %v264
    %v282 = vmul.f32 %v26, %v264
    %v283 = vmul.f32 %v27, %v265
    %v284 = vmul.f32 %v28, %v265
    %v285 = vmul.f32 %v29, %v266
    %v286 = vmul.f32 %v30, %v266
    %v287 = vmul.f32 %v31, %v267
    %v288 = vmul.f32 %v32, %v267
    %v289 = vmul.f32 %v33, %v268
    %v290 = vmul.f32 %v34, %v268
    %v291 = vmul.f32 %v35, %v269
    %v292 = vmul.f32 %v36, %v269
    %v293 = vmul.f32 %v37, %v270
    %v294 = vmul.f32 %v38, %v270
    %v295 = vmul.f32 %v39, %v271
    %v296 = vmul.f32 %v40, %v271
    %v297 = vmul.f32 %v41, %v272
    %v298 = vmul.f32 %v42, %v272
    %v299 = vmul.f32 %v43, %v273
    %v300 = vmul.f32 %v44, %v273
    %v301 = vmul.f32 %v45, %v274
    %v302 = vmul.f32 %v46, %v274
    %v303 = vmul.f32 %v47, %v275
    %v304 = vmul.f32 %v48, %v275
    %v305 = vmul.f32 %v49, %v276
    %v306 = vmul.f32 %v50, %v276
    %v307 = vmul.f32 %v51, %v277
    %v308 = vmul.f32 %v52, %v277
    %v309 = vmul.f32 %v53, %v278
    %v310 = vmul.f32 %v54, %v278
    %311 = vst [vmem:[#allocation5] sm:$0xff] %v279
    %312 = vst [vmem:[#allocation5 + $0x8] sm:$0xff] %v280
    %313 = vst [vmem:[#allocation5 + $0x10] sm:$0xff] %v281
    %314 = vst [vmem:[#allocation5 + $0x18] sm:$0xff] %v282
    %315 = vst [vmem:[#allocation5 + $0x20] sm:$0xff] %v283
    %316 = vst [vmem:[#allocation5 + $0x28] sm:$0xff] %v284
    %317 = vst [vmem:[#allocation5 + $0x30] sm:$0xff] %v285
    %318 = vst [vmem:[#allocation5 + $0x38] sm:$0xff] %v286
    %319 = vst [vmem:[#allocation5 + $0x40] sm:$0xff] %v287
    %320 = vst [vmem:[#allocation5 + $0x48] sm:$0xff] %v288
    %321 = vst [vmem:[#allocation5 + $0x50] sm:$0xff] %v289
    %322 = vst [vmem:[#allocation5 + $0x58] sm:$0xff] %v290
    %323 = vst [vmem:[#allocation5 + $0x60] sm:$0xff] %v291
    %324 = vst [vmem:[#allocation5 + $0x68] sm:$0xff] %v292
    %325 = vst [vmem:[#allocation5 + $0x70] sm:$0xff] %v293
    %326 = vst [vmem:[#allocation5 + $0x78] sm:$0xff] %v294
    %327 = vst [vmem:[#allocation5 + $0x80] sm:$0xff] %v295
    %328 = vst [vmem:[#allocation5 + $0x88] sm:$0xff] %v296
    %329 = vst [vmem:[#allocation5 + $0x90] sm:$0xff] %v297
    %330 = vst [vmem:[#allocation5 + $0x98] sm:$0xff] %v298
    %331 = vst [vmem:[#allocation5 + $0xa0] sm:$0xff] %v299
    %332 = vst [vmem:[#allocation5 + $0xa8] sm:$0xff] %v300
    %333 = vst [vmem:[#allocation5 + $0xb0] sm:$0xff] %v301
    %334 = vst [vmem:[#allocation5 + $0xb8] sm:$0xff] %v302
    %335 = vst [vmem:[#allocation5 + $0xc0] sm:$0xff] %v303
    %336 = vst [vmem:[#allocation5 + $0xc8] sm:$0xff] %v304
    %337 = vst [vmem:[#allocation5 + $0xd0] sm:$0xff] %v305
    %338 = vst [vmem:[#allocation5 + $0xd8] sm:$0xff] %v306
    %339 = vst [vmem:[#allocation5 + $0xe0] sm:$0xff] %v307
    %340 = vst [vmem:[#allocation5 + $0xe8] sm:$0xff] %v308
    %341 = vst [vmem:[#allocation5 + $0xf0] sm:$0xff] %v309
    %342 = vst [vmem:[#allocation5 + $0xf8] sm:$0xff] %v310
    // Predicated region
    $region10: #{tpu_custom_call.1} parent=1 // pred_check
      _
    $region11: #{tpu_custom_call.1} parent=1 // pred_check_branch
      %344 = sbr.rel (0) target = $region13
    $region12: #{tpu_custom_call.1} parent=1 // pred_region
      %s346 = ssub.s32 4096, 4096
      %347 = vsyncadd [#allocation4], %s346
      %s348 = sshll.u32 [#allocation5], 4
      %s349 = int_to_ptr.vmem [resolvable:$true] %s348
      %354 = dma.vmem_to_hbm [thread:$0]  %s349, 4096, %s1, [#allocation4], 256, 256, 16
    $region13: #{tpu_custom_call.1} parent=1 // pred_fallthru
      _
    // Predicated region
    $region14: #{tpu_custom_call.1} parent=1 // pred_check
      _
    $region15: #{tpu_custom_call.1} parent=1 // pred_check_branch
      %356 = sbr.rel (0) target = $region17
    $region16: #{tpu_custom_call.1} parent=1 // pred_region
      %357 = dma.done [#allocation4], 4096
    $region17: #{tpu_custom_call.1} parent=1 // pred_fallthru
      _
    %358 = vsyncpa [#allocation3], 1
    %359 = vsyncpa [#allocation4], 1

</llo_original>
